<compile_context>
chip_gen: v7x
topology: tpu7x:2x2x1
jax: 0.10.0
libtpu: 0.0.40
codegen_flags: <defaults>
</compile_context>

<pallas_src>
import functools

import jax
import jax.numpy as jnp
from jax.experimental import pallas as pl
from jax.experimental.pallas import tpu as pltpu


def _round_up(x, m):
    return ((x + m - 1) // m) * m


def fc_classifier_kernel(prem_ref, hypo_ref,
                         w1p_ref, w1h_ref, w1a_ref, w1m_ref, b1_ref,
                         w2_ref, b2_ref,
                         w3_ref, b3_ref,
                         out_ref):
    p = prem_ref[...].astype(jnp.float32)
    h = hypo_ref[...].astype(jnp.float32)

    # ---- Layer 1: split-W1 accumulation replaces the lane-axis concat ------
    # features = cat([p, h, |p-h|, p*h], dim=1);  feats @ W1 == sum of 4 dots.
    x = jnp.dot(p, w1p_ref[...], preferred_element_type=jnp.float32)
    x = x + jnp.dot(h, w1h_ref[...], preferred_element_type=jnp.float32)
    x = x + jnp.dot(jnp.abs(p - h), w1a_ref[...], preferred_element_type=jnp.float32)
    x = x + jnp.dot(p * h, w1m_ref[...], preferred_element_type=jnp.float32)
    x = jnp.maximum(x + b1_ref[...], 0.0)            # Dropout -> Linear -> ReLU

    # ---- Layer 2 ------------------------------------------------------------
    x = jnp.dot(x, w2_ref[...], preferred_element_type=jnp.float32)
    x = jnp.maximum(x + b2_ref[...], 0.0)             # Dropout -> Linear -> ReLU

    # ---- Layer 3 (lane-dense padded output) ---------------------------------
    x = jnp.dot(x, w3_ref[...], preferred_element_type=jnp.float32)
    out_ref[...] = (x + b3_ref[...]).astype(out_ref.dtype)


@functools.partial(jax.jit, static_argnames=("block_b",))
def fc_classifier(prem, hypo, params, *, block_b=256):
    """prem, hypo: (B, hidden_dim) float32.  Returns (B, out_dim) float32."""
    w1, b1, w2, b2, w3, b3 = params
    B, H = prem.shape
    seq_in, fc_dim = w1.shape
    out_dim = w3.shape[1]
    assert seq_in == 4 * H, "FCClassifier expects seq_in_size == 4 * hidden_dim"

    # Lane-dense padding of the hidden / output feature dims (zero-fill => exact).
    fc_pad = _round_up(fc_dim, 128)
    out_pad = _round_up(out_dim, 128)

    # Split W1 into its four row blocks (one per concat component) and pad.
    def pad2(a, rows, cols):
        return jnp.pad(a, ((0, rows - a.shape[0]), (0, cols - a.shape[1])))

    w1p = pad2(w1[0 * H:1 * H], H, fc_pad)
    w1h = pad2(w1[1 * H:2 * H], H, fc_pad)
    w1a = pad2(w1[2 * H:3 * H], H, fc_pad)
    w1m = pad2(w1[3 * H:4 * H], H, fc_pad)
    b1p = pad2(b1, 1, fc_pad)
    w2p = pad2(w2, fc_pad, fc_pad)
    b2p = pad2(b2, 1, fc_pad)
    w3p = pad2(w3, fc_pad, out_pad)
    b3p = pad2(b3, 1, out_pad)

    # Batch tiling: TB rows per grid step (sublane-aligned), pad B up to a
    # multiple of TB so every tile is full.  Padded rows are sliced off below.
    TB = min(block_b, _round_up(B, 8))
    B_pad = _round_up(B, TB)
    prem_p = jnp.pad(prem, ((0, B_pad - B), (0, 0)))
    hypo_p = jnp.pad(hypo, ((0, B_pad - B), (0, 0)))

    batch_spec = pl.BlockSpec((TB, H), lambda i: (i, 0))
    resident = lambda shape: pl.BlockSpec(shape, lambda i: (0, 0))  # stays in VMEM

    out_padded = pl.pallas_call(
        fc_classifier_kernel,
        out_shape=jax.ShapeDtypeStruct((B_pad, out_pad), jnp.float32),
        grid=(pl.cdiv(B_pad, TB),),
        in_specs=[
            batch_spec,                 # prem tile
            batch_spec,                 # hypo tile
            resident((H, fc_pad)),      # W1_p
            resident((H, fc_pad)),      # W1_h
            resident((H, fc_pad)),      # W1_abs
            resident((H, fc_pad)),      # W1_mul
            resident((1, fc_pad)),      # b1
            resident((fc_pad, fc_pad)),  # W2
            resident((1, fc_pad)),      # b2
            resident((fc_pad, out_pad)),  # W3
            resident((1, out_pad)),     # b3
        ],
        out_specs=pl.BlockSpec((TB, out_pad), lambda i: (i, 0)),
        compiler_params=pltpu.CompilerParams(
            dimension_semantics=("parallel",),   # megacore on v7x; harmless elsewhere
        ),
    )(prem_p, hypo_p, w1p, w1h, w1a, w1m, b1p, w2p, b2p, w3p, b3p)

    return out_padded[:B, :out_dim]


def init_params(key, hidden_dim, fc_dim, out_dim):
    """Deterministic PyTorch-style uniform init; weights stored as (in, out)."""
    seq_in_size = 4 * hidden_dim  # default encoder_type (not BiLSTMMaxPool / HBMP)

    def linear(k, fan_in, fan_out):
        kw, kb = jax.random.split(k)
        bound = 1.0 / jnp.sqrt(fan_in)
        w = jax.random.uniform(kw, (fan_in, fan_out), jnp.float32, -bound, bound)
        b = jax.random.uniform(kb, (1, fan_out), jnp.float32, -bound, bound)
        return w, b

    k1, k2, k3 = jax.random.split(key, 3)
    w1, b1 = linear(k1, seq_in_size, fc_dim)
    w2, b2 = linear(k2, fc_dim, fc_dim)
    w3, b3 = linear(k3, fc_dim, out_dim)
    return (w1, b1, w2, b2, w3, b3)


def reference(prem, hypo, params):
    w1, b1, w2, b2, w3, b3 = params
    feats = jnp.concatenate([prem, hypo, jnp.abs(prem - hypo), prem * hypo], axis=1)
    x = jnp.maximum(feats @ w1 + b1, 0.0)
    x = jnp.maximum(x @ w2 + b2, 0.0)
    return x @ w3 + b3


if __name__ == "__main__":
    # Small config consistent with the module:
    #   hidden_dim=32 -> seq_in_size = 4*32 = 128, fc_dim=64, out_dim=3
    batch, hidden_dim, fc_dim, out_dim = 8, 32, 64, 3

    key = jax.random.PRNGKey(0)
    kp, kh, kparams = jax.random.split(key, 3)
    prem = jax.random.normal(kp, (batch, hidden_dim), jnp.float32)
    hypo = jax.random.normal(kh, (batch, hidden_dim), jnp.float32)
    params = init_params(kparams, hidden_dim, fc_dim, out_dim)

    out = fc_classifier(prem, hypo, params)
    out = jax.block_until_ready(out)

    ref = reference(prem, hypo, params)
    assert out.shape == (batch, out_dim)
    assert jnp.allclose(out, ref, atol=1e-5, rtol=1e-5)

    # Also exercise a batch that is not a multiple of the tile size.
    prem2 = jax.random.normal(jax.random.PRNGKey(1), (13, hidden_dim), jnp.float32)
    hypo2 = jax.random.normal(jax.random.PRNGKey(2), (13, hidden_dim), jnp.float32)
    out2 = jax.block_until_ready(fc_classifier(prem2, hypo2, params))
    assert out2.shape == (13, out_dim)
    assert jnp.allclose(out2, reference(prem2, hypo2, params), atol=1e-5, rtol=1e-5)

    print("KERNEL_OK")
</pallas_src>

<mosaic_0001>
module attributes {stable_mosaic.version = 11 : i64} {
  func.func @fc_classifier_kernel(%arg0: i32, %arg1: memref<8x32xf32, #tpu.memory_space<vmem>>, %arg2: memref<8x32xf32, #tpu.memory_space<vmem>>, %arg3: memref<32x128xf32, #tpu.memory_space<vmem>>, %arg4: memref<32x128xf32, #tpu.memory_space<vmem>>, %arg5: memref<32x128xf32, #tpu.memory_space<vmem>>, %arg6: memref<32x128xf32, #tpu.memory_space<vmem>>, %arg7: memref<1x128xf32, #tpu.memory_space<vmem>>, %arg8: memref<128x128xf32, #tpu.memory_space<vmem>>, %arg9: memref<1x128xf32, #tpu.memory_space<vmem>>, %arg10: memref<128x128xf32, #tpu.memory_space<vmem>>, %arg11: memref<1x128xf32, #tpu.memory_space<vmem>>, %arg12: memref<8x128xf32, #tpu.memory_space<vmem>>) attributes {dimension_semantics = [#tpu.dimension_semantics<parallel>], iteration_bounds = array<i64: 1>, scalar_prefetch = 0 : i64, scratch_operands = 0 : i64, tpu.core_type = #tpu.core_type<tc>, window_params = [{transform_indices = @transform_0, window_bounds = array<i64: 8, 32>}, {transform_indices = @transform_1, window_bounds = array<i64: 8, 32>}, {pipeline_mode = #tpu.pipeline_mode<synchronous>, transform_indices = @transform_2, window_bounds = array<i64: 32, 128>}, {pipeline_mode = #tpu.pipeline_mode<synchronous>, transform_indices = @transform_3, window_bounds = array<i64: 32, 128>}, {pipeline_mode = #tpu.pipeline_mode<synchronous>, transform_indices = @transform_4, window_bounds = array<i64: 32, 128>}, {pipeline_mode = #tpu.pipeline_mode<synchronous>, transform_indices = @transform_5, window_bounds = array<i64: 32, 128>}, {pipeline_mode = #tpu.pipeline_mode<synchronous>, transform_indices = @transform_6, window_bounds = array<i64: 1, 128>}, {pipeline_mode = #tpu.pipeline_mode<synchronous>, transform_indices = @transform_7, window_bounds = array<i64: 128, 128>}, {pipeline_mode = #tpu.pipeline_mode<synchronous>, transform_indices = @transform_8, window_bounds = array<i64: 1, 128>}, {pipeline_mode = #tpu.pipeline_mode<synchronous>, transform_indices = @transform_9, window_bounds = array<i64: 128, 128>}, {pipeline_mode = #tpu.pipeline_mode<synchronous>, transform_indices = @transform_10, window_bounds = array<i64: 1, 128>}, {transform_indices = @transform_11, window_bounds = array<i64: 8, 128>}]} {
    %c0 = arith.constant 0 : index
    %c0_0 = arith.constant 0 : index
    %0 = vector.load %arg1[%c0, %c0_0] : memref<8x32xf32, #tpu.memory_space<vmem>>, vector<8x32xf32>
    %c0_1 = arith.constant 0 : index
    %c0_2 = arith.constant 0 : index
    %1 = vector.load %arg2[%c0_1, %c0_2] : memref<8x32xf32, #tpu.memory_space<vmem>>, vector<8x32xf32>
    %c0_3 = arith.constant 0 : index
    %c0_4 = arith.constant 0 : index
    %2 = vector.load %arg3[%c0_3, %c0_4] : memref<32x128xf32, #tpu.memory_space<vmem>>, vector<32x128xf32>
    %cst = arith.constant dense<0.000000e+00> : vector<8x128xf32>
    %3 = tpu.matmul %0, %2, %cst {dimension_numbers = #tpu.dot_dimension_numbers<[1], [0], [0], [1], [0, 0, 1, 1], [], []>} : vector<8x32xf32>, vector<32x128xf32>, vector<8x128xf32> -> vector<8x128xf32>
    %c0_5 = arith.constant 0 : index
    %c0_6 = arith.constant 0 : index
    %4 = vector.load %arg4[%c0_5, %c0_6] : memref<32x128xf32, #tpu.memory_space<vmem>>, vector<32x128xf32>
    %cst_7 = arith.constant dense<0.000000e+00> : vector<8x128xf32>
    %5 = tpu.matmul %1, %4, %cst_7 {dimension_numbers = #tpu.dot_dimension_numbers<[1], [0], [0], [1], [0, 0, 1, 1], [], []>} : vector<8x32xf32>, vector<32x128xf32>, vector<8x128xf32> -> vector<8x128xf32>
    %6 = arith.addf %3, %5 : vector<8x128xf32>
    %7 = arith.subf %0, %1 : vector<8x32xf32>
    %8 = math.absf %7 : vector<8x32xf32>
    %c0_8 = arith.constant 0 : index
    %c0_9 = arith.constant 0 : index
    %9 = vector.load %arg5[%c0_8, %c0_9] : memref<32x128xf32, #tpu.memory_space<vmem>>, vector<32x128xf32>
    %cst_10 = arith.constant dense<0.000000e+00> : vector<8x128xf32>
    %10 = tpu.matmul %8, %9, %cst_10 {dimension_numbers = #tpu.dot_dimension_numbers<[1], [0], [0], [1], [0, 0, 1, 1], [], []>} : vector<8x32xf32>, vector<32x128xf32>, vector<8x128xf32> -> vector<8x128xf32>
    %11 = arith.addf %6, %10 : vector<8x128xf32>
    %12 = arith.mulf %0, %1 : vector<8x32xf32>
    %c0_11 = arith.constant 0 : index
    %c0_12 = arith.constant 0 : index
    %13 = vector.load %arg6[%c0_11, %c0_12] : memref<32x128xf32, #tpu.memory_space<vmem>>, vector<32x128xf32>
    %cst_13 = arith.constant dense<0.000000e+00> : vector<8x128xf32>
    %14 = tpu.matmul %12, %13, %cst_13 {dimension_numbers = #tpu.dot_dimension_numbers<[1], [0], [0], [1], [0, 0, 1, 1], [], []>} : vector<8x32xf32>, vector<32x128xf32>, vector<8x128xf32> -> vector<8x128xf32>
    %15 = arith.addf %11, %14 : vector<8x128xf32>
    %c0_14 = arith.constant 0 : index
    %c0_15 = arith.constant 0 : index
    %16 = vector.load %arg7[%c0_14, %c0_15] : memref<1x128xf32, #tpu.memory_space<vmem>>, vector<1x128xf32>
    %17 = vector.broadcast %16 : vector<1x128xf32> to vector<8x128xf32>
    %18 = arith.addf %15, %17 : vector<8x128xf32>
    %cst_16 = arith.constant 0.000000e+00 : f32
    %19 = vector.broadcast %cst_16 : f32 to vector<8x128xf32>
    %20 = arith.maximumf %18, %19 : vector<8x128xf32>
    %c0_17 = arith.constant 0 : index
    %c0_18 = arith.constant 0 : index
    %21 = vector.load %arg8[%c0_17, %c0_18] : memref<128x128xf32, #tpu.memory_space<vmem>>, vector<128x128xf32>
    %cst_19 = arith.constant dense<0.000000e+00> : vector<8x128xf32>
    %22 = tpu.matmul %20, %21, %cst_19 {dimension_numbers = #tpu.dot_dimension_numbers<[1], [0], [0], [1], [0, 0, 1, 1], [], []>} : vector<8x128xf32>, vector<128x128xf32>, vector<8x128xf32> -> vector<8x128xf32>
    %c0_20 = arith.constant 0 : index
    %c0_21 = arith.constant 0 : index
    %23 = vector.load %arg9[%c0_20, %c0_21] : memref<1x128xf32, #tpu.memory_space<vmem>>, vector<1x128xf32>
    %24 = vector.broadcast %23 : vector<1x128xf32> to vector<8x128xf32>
    %25 = arith.addf %22, %24 : vector<8x128xf32>
    %cst_22 = arith.constant 0.000000e+00 : f32
    %26 = vector.broadcast %cst_22 : f32 to vector<8x128xf32>
    %27 = arith.maximumf %25, %26 : vector<8x128xf32>
    %c0_23 = arith.constant 0 : index
    %c0_24 = arith.constant 0 : index
    %28 = vector.load %arg10[%c0_23, %c0_24] : memref<128x128xf32, #tpu.memory_space<vmem>>, vector<128x128xf32>
    %cst_25 = arith.constant dense<0.000000e+00> : vector<8x128xf32>
    %29 = tpu.matmul %27, %28, %cst_25 {dimension_numbers = #tpu.dot_dimension_numbers<[1], [0], [0], [1], [0, 0, 1, 1], [], []>} : vector<8x128xf32>, vector<128x128xf32>, vector<8x128xf32> -> vector<8x128xf32>
    %c0_26 = arith.constant 0 : index
    %c0_27 = arith.constant 0 : index
    %30 = vector.load %arg11[%c0_26, %c0_27] : memref<1x128xf32, #tpu.memory_space<vmem>>, vector<1x128xf32>
    %31 = vector.broadcast %30 : vector<1x128xf32> to vector<8x128xf32>
    %32 = arith.addf %29, %31 : vector<8x128xf32>
    %c0_28 = arith.constant 0 : index
    %c0_29 = arith.constant 0 : index
    %33 = vector.load %arg12[%c0_28, %c0_29] : memref<8x128xf32, #tpu.memory_space<vmem>>, vector<8x128xf32>
    tpu.vector_store %arg12[%c0_28, %c0_29], %32 {strides = array<i32>} : memref<8x128xf32, #tpu.memory_space<vmem>>, vector<8x128xf32>,
    return
  }
  func.func @transform_0(%arg0: i32) -> (i32, i32) {
    %c0_i32 = arith.constant 0 : i32
    %c0_i32_0 = arith.constant 0 : i32
    return %arg0, %c0_i32 : i32, i32
  }
  func.func @transform_1(%arg0: i32) -> (i32, i32) {
    %c0_i32 = arith.constant 0 : i32
    %c0_i32_0 = arith.constant 0 : i32
    return %arg0, %c0_i32 : i32, i32
  }
  func.func @transform_2(%arg0: i32) -> (i32, i32) {
    %c0_i32 = arith.constant 0 : i32
    %c0_i32_0 = arith.constant 0 : i32
    %c0_i32_1 = arith.constant 0 : i32
    return %c0_i32, %c0_i32_0 : i32, i32
  }
  func.func @transform_3(%arg0: i32) -> (i32, i32) {
    %c0_i32 = arith.constant 0 : i32
    %c0_i32_0 = arith.constant 0 : i32
    %c0_i32_1 = arith.constant 0 : i32
    return %c0_i32, %c0_i32_0 : i32, i32
  }
  func.func @transform_4(%arg0: i32) -> (i32, i32) {
    %c0_i32 = arith.constant 0 : i32
    %c0_i32_0 = arith.constant 0 : i32
    %c0_i32_1 = arith.constant 0 : i32
    return %c0_i32, %c0_i32_0 : i32, i32
  }
  func.func @transform_5(%arg0: i32) -> (i32, i32) {
    %c0_i32 = arith.constant 0 : i32
    %c0_i32_0 = arith.constant 0 : i32
    %c0_i32_1 = arith.constant 0 : i32
    return %c0_i32, %c0_i32_0 : i32, i32
  }
  func.func @transform_6(%arg0: i32) -> (i32, i32) {
    %c0_i32 = arith.constant 0 : i32
    %c0_i32_0 = arith.constant 0 : i32
    %c0_i32_1 = arith.constant 0 : i32
    return %c0_i32, %c0_i32_0 : i32, i32
  }
  func.func @transform_7(%arg0: i32) -> (i32, i32) {
    %c0_i32 = arith.constant 0 : i32
    %c0_i32_0 = arith.constant 0 : i32
    %c0_i32_1 = arith.constant 0 : i32
    return %c0_i32, %c0_i32_0 : i32, i32
  }
  func.func @transform_8(%arg0: i32) -> (i32, i32) {
    %c0_i32 = arith.constant 0 : i32
    %c0_i32_0 = arith.constant 0 : i32
    %c0_i32_1 = arith.constant 0 : i32
    return %c0_i32, %c0_i32_0 : i32, i32
  }
  func.func @transform_9(%arg0: i32) -> (i32, i32) {
    %c0_i32 = arith.constant 0 : i32
    %c0_i32_0 = arith.constant 0 : i32
    %c0_i32_1 = arith.constant 0 : i32
    return %c0_i32, %c0_i32_0 : i32, i32
  }
  func.func @transform_10(%arg0: i32) -> (i32, i32) {
    %c0_i32 = arith.constant 0 : i32
    %c0_i32_0 = arith.constant 0 : i32
    %c0_i32_1 = arith.constant 0 : i32
    return %c0_i32, %c0_i32_0 : i32, i32
  }
  func.func @transform_11(%arg0: i32) -> (i32, i32) {
    %c0_i32 = arith.constant 0 : i32
    %c0_i32_0 = arith.constant 0 : i32
    return %arg0, %c0_i32 : i32, i32
  }
}

</mosaic_0001>

<llo_original>
// kernel: fc_classifier.1
$region0: #{fc_classifier.1}
  #allocation0 [shape = 'u32[]', space=smem, size = 0x4, offset = 0x4, fixed_abs, tag = 'smem constant byte address 0x4 - core index']
  #allocation1 [shape = 'u32[144,128]{1,0:T(1,128)}', space=vmem, size = 0x12000, scoped, tag = 'internal scratch']
  %s0 = inlined_call_operand.vmem [shape: f32[8,32], index: 0, kind: input, shape index: {}]
  %s1 = inlined_call_operand.vmem [shape: f32[8,32], index: 1, kind: input, shape index: {}]
  %s2 = inlined_call_operand.vmem [shape: f32[32,128], index: 2, kind: input, shape index: {}]
  %s3 = inlined_call_operand.vmem [shape: f32[32,128], index: 3, kind: input, shape index: {}]
  %s4 = inlined_call_operand.vmem [shape: f32[32,128], index: 4, kind: input, shape index: {}]
  %s5 = inlined_call_operand.vmem [shape: f32[32,128], index: 5, kind: input, shape index: {}]
  %s6 = inlined_call_operand.vmem [shape: f32[1,128], index: 6, kind: input, shape index: {}]
  %s7 = inlined_call_operand.vmem [shape: f32[128,128], index: 7, kind: input, shape index: {}]
  %s8 = inlined_call_operand.vmem [shape: f32[1,128], index: 8, kind: input, shape index: {}]
  %s9 = inlined_call_operand.vmem [shape: f32[128,128], index: 9, kind: input, shape index: {}]
  %s10 = inlined_call_operand.vmem [shape: f32[1,128], index: 10, kind: input, shape index: {}]
  %s11 = inlined_call_operand.vmem [shape: f32[8,128], index: 11, kind: output, shape index: {}]
  %s12 = sld [smem:[#allocation0]]
  $region54: #{fc_classifier.1} parent=0
    _
  %s14 = ssub.s32 1, %s12
  %s15 = scalar_select 0, %s14, %s12
  // Predicated region
  $region2: #{fc_classifier.1} parent=0 // pred_check
    _
  $region3: #{fc_classifier.1} parent=0 // pred_check_branch
    %17 = sbr.rel (0) target = $region5
  $region4: #{fc_classifier.1} parent=0 // pred_region
    _
  $region5: #{fc_classifier.1} parent=0 // pred_fallthru
    _
  // Predicated region
  $region6: #{fc_classifier.1} parent=0 // pred_check
    _
  $region7: #{fc_classifier.1} parent=0 // pred_check_branch
    %19 = sbr.rel (0) target = $region9
  $region8: #{fc_classifier.1} parent=0 // pred_region
    _
  $region9: #{fc_classifier.1} parent=0 // pred_fallthru
    _
  // Predicated region
  $region10: #{fc_classifier.1} parent=0 // pred_check
    _
  $region11: #{fc_classifier.1} parent=0 // pred_check_branch
    %21 = sbr.rel (0) target = $region13
  $region12: #{fc_classifier.1} parent=0 // pred_region
    _
  $region13: #{fc_classifier.1} parent=0 // pred_fallthru
    _
  // Predicated region
  $region14: #{fc_classifier.1} parent=0 // pred_check
    _
  $region15: #{fc_classifier.1} parent=0 // pred_check_branch
    %23 = sbr.rel (0) target = $region17
  $region16: #{fc_classifier.1} parent=0 // pred_region
    _
  $region17: #{fc_classifier.1} parent=0 // pred_fallthru
    _
  // Predicated region
  $region18: #{fc_classifier.1} parent=0 // pred_check
    _
  $region19: #{fc_classifier.1} parent=0 // pred_check_branch
    %25 = sbr.rel (0) target = $region21
  $region20: #{fc_classifier.1} parent=0 // pred_region
    _
  $region21: #{fc_classifier.1} parent=0 // pred_fallthru
    _
  // Predicated region
  $region22: #{fc_classifier.1} parent=0 // pred_check
    _
  $region23: #{fc_classifier.1} parent=0 // pred_check_branch
    %27 = sbr.rel (0) target = $region25
  $region24: #{fc_classifier.1} parent=0 // pred_region
    _
  $region25: #{fc_classifier.1} parent=0 // pred_fallthru
    _
  // Predicated region
  $region26: #{fc_classifier.1} parent=0 // pred_check
    _
  $region27: #{fc_classifier.1} parent=0 // pred_check_branch
    %29 = sbr.rel (0) target = $region29
  $region28: #{fc_classifier.1} parent=0 // pred_region
    _
  $region29: #{fc_classifier.1} parent=0 // pred_fallthru
    _
  // Predicated region
  $region30: #{fc_classifier.1} parent=0 // pred_check
    _
  $region31: #{fc_classifier.1} parent=0 // pred_check_branch
    %31 = sbr.rel (0) target = $region33
  $region32: #{fc_classifier.1} parent=0 // pred_region
    _
  $region33: #{fc_classifier.1} parent=0 // pred_fallthru
    _
  // Predicated region
  $region34: #{fc_classifier.1} parent=0 // pred_check
    _
  $region35: #{fc_classifier.1} parent=0 // pred_check_branch
    %33 = sbr.rel (0) target = $region37
  $region36: #{fc_classifier.1} parent=0 // pred_region
    _
  $region37: #{fc_classifier.1} parent=0 // pred_fallthru
    _
  // Predicated region
  $region38: #{fc_classifier.1} parent=0 // pred_check
    _
  $region39: #{fc_classifier.1} parent=0 // pred_check_branch
    %35 = sbr.rel (0) target = $region41
  $region40: #{fc_classifier.1} parent=0 // pred_region
    _
  $region41: #{fc_classifier.1} parent=0 // pred_fallthru
    _
  // Predicated region
  $region42: #{fc_classifier.1} parent=0 // pred_check
    _
  $region43: #{fc_classifier.1} parent=0 // pred_check_branch
    %37 = sbr.rel (0) target = $region45
  $region44: #{fc_classifier.1} parent=0 // pred_region
    _
  $region45: #{fc_classifier.1} parent=0 // pred_fallthru
    _
  %v38 = vld [vmem:[%s0] sm:$0xff]
  %v39 = vld [vmem:[%s1] sm:$0xff]
  %v40 = vld [vmem:[%s2] sm:$0xff]
  %v41 = vld [vmem:[%s2 + $0x8] sm:$0xff]
  %v42 = vld [vmem:[%s2 + $0x10] sm:$0xff]
  %v43 = vld [vmem:[%s2 + $0x18] sm:$0xff]
  %v44 = vld [vmem:[%s3] sm:$0xff]
  %v45 = vld [vmem:[%s3 + $0x8] sm:$0xff]
  %v46 = vld [vmem:[%s3 + $0x10] sm:$0xff]
  %v47 = vld [vmem:[%s3 + $0x18] sm:$0xff]
  %vm48 = vcmask 261120
  %v50 = vsel %vm48, %v39, 0
  %52 = vmatprep.subr.mxu0 0.0
  %53 = vmatpush1.msra.mxu0 %v44
  %54 = vmatprep.subr.mxu0 0.0
  %55 = vmatpush1.msra.mxu0 %v45
  %56 = vmatprep.subr.mxu0 0.0
  %57 = vmatpush1.msra.mxu0 %v46
  %58 = vmatprep.subr.mxu0 0.0
  %59 = vmatpush1.msra.mxu0 %v47
  %60 = vmatprep.subr.mxu0 0.0
  %61 = vmatpush1.msra.mxu0 0.0
  %62 = vmatprep.subr.mxu0 0.0
  %63 = vmatpush1.msra.mxu0 0.0
  %64 = vmatprep.subr.mxu0 0.0
  %65 = vmatpush1.msra.mxu0 0.0
  %66 = vmatprep.subr.mxu0 0.0
  %67 = vmatpush1.msra.mxu0 0.0
  %68 = vmatprep.subr.mxu0 0.0
  %69 = vmatpush1.msra.mxu0 0.0
  %70 = vmatprep.subr.mxu0 0.0
  %71 = vmatpush1.msra.mxu0 0.0
  %72 = vmatprep.subr.mxu0 0.0
  %73 = vmatpush1.msra.mxu0 0.0
  %74 = vmatprep.subr.mxu0 0.0
  %75 = vmatpush1.msra.mxu0 0.0
  %76 = vmatprep.subr.mxu0 0.0
  %77 = vmatpush1.msra.mxu0 0.0
  %78 = vmatprep.subr.mxu0 0.0
  %79 = vmatpush1.msra.mxu0 0.0
  %80 = vmatprep.subr.mxu0 0.0
  %81 = vmatpush1.msra.mxu0 0.0
  %82 = vmatprep.subr.mxu0 0.0
  %83 = vmatpush1.msra.mxu0 0.0
  %84 = vmatprep.subr.mxu0 0.0
  %85 = vmatpush1.msra.mxu0 0.0
  %86 = vmatprep.subr.mxu0 0.0
  %87 = vmatpush1.msra.mxu0 0.0
  %88 = vmatprep.subr.mxu0 0.0
  %89 = vmatpush1.msra.mxu0 0.0
  %90 = vmatprep.subr.mxu0 0.0
  %91 = vmatpush1.msra.mxu0 0.0
  %92 = vmatprep.subr.mxu0 0.0
  %93 = vmatpush1.msra.mxu0 0.0
  %94 = vmatprep.subr.mxu0 0.0
  %95 = vmatpush1.msra.mxu0 0.0
  %96 = vmatprep.subr.mxu0 0.0
  %97 = vmatpush1.msra.mxu0 0.0
  %98 = vmatprep.subr.mxu0 0.0
  %99 = vmatpush1.msra.mxu0 0.0
  %100 = vmatprep.subr.mxu0 0.0
  %101 = vmatpush1.msra.mxu0 0.0
  %102 = vmatprep.subr.mxu0 0.0
  %103 = vmatpush1.msra.mxu0 0.0
  %104 = vmatprep.subr.mxu0 0.0
  %105 = vmatpush1.msra.mxu0 0.0
  %106 = vmatprep.subr.mxu0 0.0
  %107 = vmatpush1.msra.mxu0 0.0
  %108 = vmatprep.subr.mxu0 0.0
  %109 = vmatpush1.msra.mxu0 0.0
  %110 = vmatprep.subr.mxu0 0.0
  %111 = vmatpush1.msra.mxu0 0.0
  %112 = vmatprep.subr.mxu0 0.0
  %113 = vmatpush1.msra.mxu0 0.0
  %114 = vmatprep.subr.mxu0 0.0
  %115 = vmatpush1.msra.mxu0 0.0
  %116 = vmatprep.mubr.f32.mxu0 0.0
  %117 = vmatmul.mubr.f32.gmra.mrb[0].mxu0 %v50
  %v118 = vpop.f32.mrb[0].mxu0
  %v119 = vadd.f32 0.0, %v118
  %v120 = vpop.f32.mrb[0].mxu0
  %121 = vdwg.mxu0
  %v123 = vsel %vm48, %v38, 0
  %125 = vmatprep.subr.mxu0 0.0
  %126 = vmatpush1.msra.mxu0 %v40
  %127 = vmatprep.subr.mxu0 0.0
  %128 = vmatpush1.msra.mxu0 %v41
  %129 = vmatprep.subr.mxu0 0.0
  %130 = vmatpush1.msra.mxu0 %v42
  %131 = vmatprep.subr.mxu0 0.0
  %132 = vmatpush1.msra.mxu0 %v43
  %133 = vmatprep.subr.mxu0 0.0
  %134 = vmatpush1.msra.mxu0 0.0
  %135 = vmatprep.subr.mxu0 0.0
  %136 = vmatpush1.msra.mxu0 0.0
  %137 = vmatprep.subr.mxu0 0.0
  %138 = vmatpush1.msra.mxu0 0.0
  %139 = vmatprep.subr.mxu0 0.0
  %140 = vmatpush1.msra.mxu0 0.0
  %141 = vmatprep.subr.mxu0 0.0
  %142 = vmatpush1.msra.mxu0 0.0
  %143 = vmatprep.subr.mxu0 0.0
  %144 = vmatpush1.msra.mxu0 0.0
  %145 = vmatprep.subr.mxu0 0.0
  %146 = vmatpush1.msra.mxu0 0.0
  %147 = vmatprep.subr.mxu0 0.0
  %148 = vmatpush1.msra.mxu0 0.0
  %149 = vmatprep.subr.mxu0 0.0
  %150 = vmatpush1.msra.mxu0 0.0
  %151 = vmatprep.subr.mxu0 0.0
  %152 = vmatpush1.msra.mxu0 0.0
  %153 = vmatprep.subr.mxu0 0.0
  %154 = vmatpush1.msra.mxu0 0.0
  %155 = vmatprep.subr.mxu0 0.0
  %156 = vmatpush1.msra.mxu0 0.0
  %157 = vmatprep.subr.mxu0 0.0
  %158 = vmatpush1.msra.mxu0 0.0
  %159 = vmatprep.subr.mxu0 0.0
  %160 = vmatpush1.msra.mxu0 0.0
  %161 = vmatprep.subr.mxu0 0.0
  %162 = vmatpush1.msra.mxu0 0.0
  %163 = vmatprep.subr.mxu0 0.0
  %164 = vmatpush1.msra.mxu0 0.0
  %165 = vmatprep.subr.mxu0 0.0
  %166 = vmatpush1.msra.mxu0 0.0
  %167 = vmatprep.subr.mxu0 0.0
  %168 = vmatpush1.msra.mxu0 0.0
  %169 = vmatprep.subr.mxu0 0.0
  %170 = vmatpush1.msra.mxu0 0.0
  %171 = vmatprep.subr.mxu0 0.0
  %172 = vmatpush1.msra.mxu0 0.0
  %173 = vmatprep.subr.mxu0 0.0
  %174 = vmatpush1.msra.mxu0 0.0
  %175 = vmatprep.subr.mxu0 0.0
  %176 = vmatpush1.msra.mxu0 0.0
  %177 = vmatprep.subr.mxu0 0.0
  %178 = vmatpush1.msra.mxu0 0.0
  %179 = vmatprep.subr.mxu0 0.0
  %180 = vmatpush1.msra.mxu0 0.0
  %181 = vmatprep.subr.mxu0 0.0
  %182 = vmatpush1.msra.mxu0 0.0
  %183 = vmatprep.subr.mxu0 0.0
  %184 = vmatpush1.msra.mxu0 0.0
  %185 = vmatprep.subr.mxu0 0.0
  %186 = vmatpush1.msra.mxu0 0.0
  %187 = vmatprep.subr.mxu0 0.0
  %188 = vmatpush1.msra.mxu0 0.0
  %189 = vmatprep.mubr.f32.mxu0 0.0
  %190 = vmatmul.mubr.f32.gmra.mrb[0].mxu0 %v123
  %v191 = vpop.f32.mrb[0].mxu0
  %v192 = vadd.f32 %v119, %v191
  %v193 = vpop.f32.mrb[0].mxu0
  %194 = vdwg.mxu0
  %v195 = vsub.f32 %v38, %v39
  %v196 = vand.u32 2147483647, %v195
  %v197 = vld [vmem:[%s4] sm:$0xff]
  %v198 = vld [vmem:[%s4 + $0x8] sm:$0xff]
  %v199 = vld [vmem:[%s4 + $0x10] sm:$0xff]
  %v200 = vld [vmem:[%s4 + $0x18] sm:$0xff]
  %v202 = vsel %vm48, %v196, 0
  %204 = vmatprep.subr.mxu0 0.0
  %205 = vmatpush1.msra.mxu0 %v197
  %206 = vmatprep.subr.mxu0 0.0
  %207 = vmatpush1.msra.mxu0 %v198
  %208 = vmatprep.subr.mxu0 0.0
  %209 = vmatpush1.msra.mxu0 %v199
  %210 = vmatprep.subr.mxu0 0.0
  %211 = vmatpush1.msra.mxu0 %v200
  %212 = vmatprep.subr.mxu0 0.0
  %213 = vmatpush1.msra.mxu0 0.0
  %214 = vmatprep.subr.mxu0 0.0
  %215 = vmatpush1.msra.mxu0 0.0
  %216 = vmatprep.subr.mxu0 0.0
  %217 = vmatpush1.msra.mxu0 0.0
  %218 = vmatprep.subr.mxu0 0.0
  %219 = vmatpush1.msra.mxu0 0.0
  %220 = vmatprep.subr.mxu0 0.0
  %221 = vmatpush1.msra.mxu0 0.0
  %222 = vmatprep.subr.mxu0 0.0
  %223 = vmatpush1.msra.mxu0 0.0
  %224 = vmatprep.subr.mxu0 0.0
  %225 = vmatpush1.msra.mxu0 0.0
  %226 = vmatprep.subr.mxu0 0.0
  %227 = vmatpush1.msra.mxu0 0.0
  %228 = vmatprep.subr.mxu0 0.0
  %229 = vmatpush1.msra.mxu0 0.0
  %230 = vmatprep.subr.mxu0 0.0
  %231 = vmatpush1.msra.mxu0 0.0
  %232 = vmatprep.subr.mxu0 0.0
  %233 = vmatpush1.msra.mxu0 0.0
  %234 = vmatprep.subr.mxu0 0.0
  %235 = vmatpush1.msra.mxu0 0.0
  %236 = vmatprep.subr.mxu0 0.0
  %237 = vmatpush1.msra.mxu0 0.0
  %238 = vmatprep.subr.mxu0 0.0
  %239 = vmatpush1.msra.mxu0 0.0
  %240 = vmatprep.subr.mxu0 0.0
  %241 = vmatpush1.msra.mxu0 0.0
  %242 = vmatprep.subr.mxu0 0.0
  %243 = vmatpush1.msra.mxu0 0.0
  %244 = vmatprep.subr.mxu0 0.0
  %245 = vmatpush1.msra.mxu0 0.0
  %246 = vmatprep.subr.mxu0 0.0
  %247 = vmatpush1.msra.mxu0 0.0
  %248 = vmatprep.subr.mxu0 0.0
  %249 = vmatpush1.msra.mxu0 0.0
  %250 = vmatprep.subr.mxu0 0.0
  %251 = vmatpush1.msra.mxu0 0.0
  %252 = vmatprep.subr.mxu0 0.0
  %253 = vmatpush1.msra.mxu0 0.0
  %254 = vmatprep.subr.mxu0 0.0
  %255 = vmatpush1.msra.mxu0 0.0
  %256 = vmatprep.subr.mxu0 0.0
  %257 = vmatpush1.msra.mxu0 0.0
  %258 = vmatprep.subr.mxu0 0.0
  %259 = vmatpush1.msra.mxu0 0.0
  %260 = vmatprep.subr.mxu0 0.0
  %261 = vmatpush1.msra.mxu0 0.0
  %262 = vmatprep.subr.mxu0 0.0
  %263 = vmatpush1.msra.mxu0 0.0
  %264 = vmatprep.subr.mxu0 0.0
  %265 = vmatpush1.msra.mxu0 0.0
  %266 = vmatprep.subr.mxu0 0.0
  %267 = vmatpush1.msra.mxu0 0.0
  %268 = vmatprep.mubr.f32.mxu0 0.0
  %269 = vmatmul.mubr.f32.gmra.mrb[0].mxu0 %v202
  %v270 = vpop.f32.mrb[0].mxu0
  %v271 = vadd.f32 0.0, %v270
  %v272 = vpop.f32.mrb[0].mxu0
  %273 = vdwg.mxu0
  %v274 = vadd.f32 %v192, %v271
  %v275 = vmul.f32 %v38, %v39
  %v276 = vld [vmem:[%s5] sm:$0xff]
  %v277 = vld [vmem:[%s5 + $0x8] sm:$0xff]
  %v278 = vld [vmem:[%s5 + $0x10] sm:$0xff]
  %v279 = vld [vmem:[%s5 + $0x18] sm:$0xff]
  %v281 = vsel %vm48, %v275, 0
  %283 = vmatprep.subr.mxu0 0.0
  %284 = vmatpush1.msra.mxu0 %v276
  %285 = vmatprep.subr.mxu0 0.0
  %286 = vmatpush1.msra.mxu0 %v277
  %287 = vmatprep.subr.mxu0 0.0
  %288 = vmatpush1.msra.mxu0 %v278
  %289 = vmatprep.subr.mxu0 0.0
  %290 = vmatpush1.msra.mxu0 %v279
  %291 = vmatprep.subr.mxu0 0.0
  %292 = vmatpush1.msra.mxu0 0.0
  %293 = vmatprep.subr.mxu0 0.0
  %294 = vmatpush1.msra.mxu0 0.0
  %295 = vmatprep.subr.mxu0 0.0
  %296 = vmatpush1.msra.mxu0 0.0
  %297 = vmatprep.subr.mxu0 0.0
  %298 = vmatpush1.msra.mxu0 0.0
  %299 = vmatprep.subr.mxu0 0.0
  %300 = vmatpush1.msra.mxu0 0.0
  %301 = vmatprep.subr.mxu0 0.0
  %302 = vmatpush1.msra.mxu0 0.0
  %303 = vmatprep.subr.mxu0 0.0
  %304 = vmatpush1.msra.mxu0 0.0
  %305 = vmatprep.subr.mxu0 0.0
  %306 = vmatpush1.msra.mxu0 0.0
  %307 = vmatprep.subr.mxu0 0.0
  %308 = vmatpush1.msra.mxu0 0.0
  %309 = vmatprep.subr.mxu0 0.0
  %310 = vmatpush1.msra.mxu0 0.0
  %311 = vmatprep.subr.mxu0 0.0
  %312 = vmatpush1.msra.mxu0 0.0
  %313 = vmatprep.subr.mxu0 0.0
  %314 = vmatpush1.msra.mxu0 0.0
  %315 = vmatprep.subr.mxu0 0.0
  %316 = vmatpush1.msra.mxu0 0.0
  %317 = vmatprep.subr.mxu0 0.0
  %318 = vmatpush1.msra.mxu0 0.0
  %319 = vmatprep.subr.mxu0 0.0
  %320 = vmatpush1.msra.mxu0 0.0
  %321 = vmatprep.subr.mxu0 0.0
  %322 = vmatpush1.msra.mxu0 0.0
  %323 = vmatprep.subr.mxu0 0.0
  %324 = vmatpush1.msra.mxu0 0.0
  %325 = vmatprep.subr.mxu0 0.0
  %326 = vmatpush1.msra.mxu0 0.0
  %327 = vmatprep.subr.mxu0 0.0
  %328 = vmatpush1.msra.mxu0 0.0
  %329 = vmatprep.subr.mxu0 0.0
  %330 = vmatpush1.msra.mxu0 0.0
  %331 = vmatprep.subr.mxu0 0.0
  %332 = vmatpush1.msra.mxu0 0.0
  %333 = vmatprep.subr.mxu0 0.0
  %334 = vmatpush1.msra.mxu0 0.0
  %335 = vmatprep.subr.mxu0 0.0
  %336 = vmatpush1.msra.mxu0 0.0
  %337 = vmatprep.subr.mxu0 0.0
  %338 = vmatpush1.msra.mxu0 0.0
  %339 = vmatprep.subr.mxu0 0.0
  %340 = vmatpush1.msra.mxu0 0.0
  %341 = vmatprep.subr.mxu0 0.0
  %342 = vmatpush1.msra.mxu0 0.0
  %343 = vmatprep.subr.mxu0 0.0
  %344 = vmatpush1.msra.mxu0 0.0
  %345 = vmatprep.subr.mxu0 0.0
  %346 = vmatpush1.msra.mxu0 0.0
  %347 = vmatprep.mubr.f32.mxu0 0.0
  %348 = vmatmul.mubr.f32.gmra.mrb[0].mxu0 %v281
  %v349 = vpop.f32.mrb[0].mxu0
  %v350 = vadd.f32 0.0, %v349
  %v351 = vpop.f32.mrb[0].mxu0
  %352 = vdwg.mxu0
  %v353 = vadd.f32 %v274, %v350
  %v354 = vld [vmem:[%s6] sm:$0x1]
  %v356 = vlaneseq
  %v357 = vshrl.u32 %v356, 7
  %v358 = vsub.s32 0, %v357
  %v359 = vrot.slane %v354, %v358
  %v361 = vadd.f32 %v353, %v359
  %v362 = vmax.f32 %v361, 0.0
  %v363 = vld [vmem:[%s7] sm:$0xff]
  %v364 = vld [vmem:[%s7 + $0x8] sm:$0xff]
  %v365 = vld [vmem:[%s7 + $0x10] sm:$0xff]
  %v366 = vld [vmem:[%s7 + $0x18] sm:$0xff]
  %v367 = vld [vmem:[%s7 + $0x20] sm:$0xff]
  %v368 = vld [vmem:[%s7 + $0x28] sm:$0xff]
  %v369 = vld [vmem:[%s7 + $0x30] sm:$0xff]
  %v370 = vld [vmem:[%s7 + $0x38] sm:$0xff]
  %v371 = vld [vmem:[%s7 + $0x40] sm:$0xff]
  %v372 = vld [vmem:[%s7 + $0x48] sm:$0xff]
  %v373 = vld [vmem:[%s7 + $0x50] sm:$0xff]
  %v374 = vld [vmem:[%s7 + $0x58] sm:$0xff]
  %v375 = vld [vmem:[%s7 + $0x60] sm:$0xff]
  %v376 = vld [vmem:[%s7 + $0x68] sm:$0xff]
  %v377 = vld [vmem:[%s7 + $0x70] sm:$0xff]
  %v378 = vld [vmem:[%s7 + $0x78] sm:$0xff]
  %v379 = vld [vmem:[%s8] sm:$0x1]
  %v381 = vlaneseq
  %v382 = vshrl.u32 %v381, 7
  %v383 = vsub.s32 0, %v382
  %v384 = vrot.slane %v379, %v383
  %386 = vmatprep.subr.mxu0 0.0
  %387 = vmatpush1.msra.mxu0 %v363
  %388 = vmatprep.subr.mxu0 0.0
  %389 = vmatpush1.msra.mxu0 %v364
  %390 = vmatprep.subr.mxu0 0.0
  %391 = vmatpush1.msra.mxu0 %v365
  %392 = vmatprep.subr.mxu0 0.0
  %393 = vmatpush1.msra.mxu0 %v366
  %394 = vmatprep.subr.mxu0 0.0
  %395 = vmatpush1.msra.mxu0 %v367
  %396 = vmatprep.subr.mxu0 0.0
  %397 = vmatpush1.msra.mxu0 %v368
  %398 = vmatprep.subr.mxu0 0.0
  %399 = vmatpush1.msra.mxu0 %v369
  %400 = vmatprep.subr.mxu0 0.0
  %401 = vmatpush1.msra.mxu0 %v370
  %402 = vmatprep.subr.mxu0 0.0
  %403 = vmatpush1.msra.mxu0 %v371
  %404 = vmatprep.subr.mxu0 0.0
  %405 = vmatpush1.msra.mxu0 %v372
  %406 = vmatprep.subr.mxu0 0.0
  %407 = vmatpush1.msra.mxu0 %v373
  %408 = vmatprep.subr.mxu0 0.0
  %409 = vmatpush1.msra.mxu0 %v374
  %410 = vmatprep.subr.mxu0 0.0
  %411 = vmatpush1.msra.mxu0 %v375
  %412 = vmatprep.subr.mxu0 0.0
  %413 = vmatpush1.msra.mxu0 %v376
  %414 = vmatprep.subr.mxu0 0.0
  %415 = vmatpush1.msra.mxu0 %v377
  %416 = vmatprep.subr.mxu0 0.0
  %417 = vmatpush1.msra.mxu0 %v378
  %418 = vmatprep.subr.mxu0 0.0
  %419 = vmatpush1.msra.mxu0 0.0
  %420 = vmatprep.subr.mxu0 0.0
  %421 = vmatpush1.msra.mxu0 0.0
  %422 = vmatprep.subr.mxu0 0.0
  %423 = vmatpush1.msra.mxu0 0.0
  %424 = vmatprep.subr.mxu0 0.0
  %425 = vmatpush1.msra.mxu0 0.0
  %426 = vmatprep.subr.mxu0 0.0
  %427 = vmatpush1.msra.mxu0 0.0
  %428 = vmatprep.subr.mxu0 0.0
  %429 = vmatpush1.msra.mxu0 0.0
  %430 = vmatprep.subr.mxu0 0.0
  %431 = vmatpush1.msra.mxu0 0.0
  %432 = vmatprep.subr.mxu0 0.0
  %433 = vmatpush1.msra.mxu0 0.0
  %434 = vmatprep.subr.mxu0 0.0
  %435 = vmatpush1.msra.mxu0 0.0
  %436 = vmatprep.subr.mxu0 0.0
  %437 = vmatpush1.msra.mxu0 0.0
  %438 = vmatprep.subr.mxu0 0.0
  %439 = vmatpush1.msra.mxu0 0.0
  %440 = vmatprep.subr.mxu0 0.0
  %441 = vmatpush1.msra.mxu0 0.0
  %442 = vmatprep.subr.mxu0 0.0
  %443 = vmatpush1.msra.mxu0 0.0
  %444 = vmatprep.subr.mxu0 0.0
  %445 = vmatpush1.msra.mxu0 0.0
  %446 = vmatprep.subr.mxu0 0.0
  %447 = vmatpush1.msra.mxu0 0.0
  %448 = vmatprep.subr.mxu0 0.0
  %449 = vmatpush1.msra.mxu0 0.0
  %450 = vmatprep.mubr.f32.mxu0 0.0
  %451 = vmatmul.mubr.f32.gmra.mrb[0].mxu0 %v362
  %v452 = vpop.f32.mrb[0].mxu0
  %v453 = vadd.f32 %v384, %v452
  %v454 = vpop.f32.mrb[0].mxu0
  %455 = vdwg.mxu0
  %v456 = vmax.f32 %v453, 0.0
  %v457 = vld [vmem:[%s9] sm:$0xff]
  %v458 = vld [vmem:[%s9 + $0x8] sm:$0xff]
  %v459 = vld [vmem:[%s9 + $0x10] sm:$0xff]
  %v460 = vld [vmem:[%s9 + $0x18] sm:$0xff]
  %v461 = vld [vmem:[%s9 + $0x20] sm:$0xff]
  %v462 = vld [vmem:[%s9 + $0x28] sm:$0xff]
  %v463 = vld [vmem:[%s9 + $0x30] sm:$0xff]
  %v464 = vld [vmem:[%s9 + $0x38] sm:$0xff]
  %v465 = vld [vmem:[%s9 + $0x40] sm:$0xff]
  %v466 = vld [vmem:[%s9 + $0x48] sm:$0xff]
  %v467 = vld [vmem:[%s9 + $0x50] sm:$0xff]
  %v468 = vld [vmem:[%s9 + $0x58] sm:$0xff]
  %v469 = vld [vmem:[%s9 + $0x60] sm:$0xff]
  %v470 = vld [vmem:[%s9 + $0x68] sm:$0xff]
  %v471 = vld [vmem:[%s9 + $0x70] sm:$0xff]
  %v472 = vld [vmem:[%s9 + $0x78] sm:$0xff]
  %v473 = vld [vmem:[%s10] sm:$0x1]
  %v475 = vlaneseq
  %v476 = vshrl.u32 %v475, 7
  %v477 = vsub.s32 0, %v476
  %v478 = vrot.slane %v473, %v477
  %480 = vmatprep.subr.mxu0 0.0
  %481 = vmatpush1.msra.mxu0 %v457
  %482 = vmatprep.subr.mxu0 0.0
  %483 = vmatpush1.msra.mxu0 %v458
  %484 = vmatprep.subr.mxu0 0.0
  %485 = vmatpush1.msra.mxu0 %v459
  %486 = vmatprep.subr.mxu0 0.0
  %487 = vmatpush1.msra.mxu0 %v460
  %488 = vmatprep.subr.mxu0 0.0
  %489 = vmatpush1.msra.mxu0 %v461
  %490 = vmatprep.subr.mxu0 0.0
  %491 = vmatpush1.msra.mxu0 %v462
  %492 = vmatprep.subr.mxu0 0.0
  %493 = vmatpush1.msra.mxu0 %v463
  %494 = vmatprep.subr.mxu0 0.0
  %495 = vmatpush1.msra.mxu0 %v464
  %496 = vmatprep.subr.mxu0 0.0
  %497 = vmatpush1.msra.mxu0 %v465
  %498 = vmatprep.subr.mxu0 0.0
  %499 = vmatpush1.msra.mxu0 %v466
  %500 = vmatprep.subr.mxu0 0.0
  %501 = vmatpush1.msra.mxu0 %v467
  %502 = vmatprep.subr.mxu0 0.0
  %503 = vmatpush1.msra.mxu0 %v468
  %504 = vmatprep.subr.mxu0 0.0
  %505 = vmatpush1.msra.mxu0 %v469
  %506 = vmatprep.subr.mxu0 0.0
  %507 = vmatpush1.msra.mxu0 %v470
  %508 = vmatprep.subr.mxu0 0.0
  %509 = vmatpush1.msra.mxu0 %v471
  %510 = vmatprep.subr.mxu0 0.0
  %511 = vmatpush1.msra.mxu0 %v472
  %512 = vmatprep.subr.mxu0 0.0
  %513 = vmatpush1.msra.mxu0 0.0
  %514 = vmatprep.subr.mxu0 0.0
  %515 = vmatpush1.msra.mxu0 0.0
  %516 = vmatprep.subr.mxu0 0.0
  %517 = vmatpush1.msra.mxu0 0.0
  %518 = vmatprep.subr.mxu0 0.0
  %519 = vmatpush1.msra.mxu0 0.0
  %520 = vmatprep.subr.mxu0 0.0
  %521 = vmatpush1.msra.mxu0 0.0
  %522 = vmatprep.subr.mxu0 0.0
  %523 = vmatpush1.msra.mxu0 0.0
  %524 = vmatprep.subr.mxu0 0.0
  %525 = vmatpush1.msra.mxu0 0.0
  %526 = vmatprep.subr.mxu0 0.0
  %527 = vmatpush1.msra.mxu0 0.0
  %528 = vmatprep.subr.mxu0 0.0
  %529 = vmatpush1.msra.mxu0 0.0
  %530 = vmatprep.subr.mxu0 0.0
  %531 = vmatpush1.msra.mxu0 0.0
  %532 = vmatprep.subr.mxu0 0.0
  %533 = vmatpush1.msra.mxu0 0.0
  %534 = vmatprep.subr.mxu0 0.0
  %535 = vmatpush1.msra.mxu0 0.0
  %536 = vmatprep.subr.mxu0 0.0
  %537 = vmatpush1.msra.mxu0 0.0
  %538 = vmatprep.subr.mxu0 0.0
  %539 = vmatpush1.msra.mxu0 0.0
  %540 = vmatprep.subr.mxu0 0.0
  %541 = vmatpush1.msra.mxu0 0.0
  %542 = vmatprep.subr.mxu0 0.0
  %543 = vmatpush1.msra.mxu0 0.0
  %544 = vmatprep.mubr.f32.mxu0 0.0
  %545 = vmatmul.mubr.f32.gmra.mrb[0].mxu0 %v456
  %v546 = vpop.f32.mrb[0].mxu0
  %v547 = vadd.f32 %v478, %v546
  %v548 = vpop.f32.mrb[0].mxu0
  %549 = vdwg.mxu0
  %550 = vst [vmem:[%s11] sm:$0xff] %v547
  // Predicated region
  $region46: #{fc_classifier.1} parent=0 // pred_check
    _
  $region47: #{fc_classifier.1} parent=0 // pred_check_branch
    %552 = sbr.rel (0) target = $region49
  $region48: #{fc_classifier.1} parent=0 // pred_region
    _
  $region49: #{fc_classifier.1} parent=0 // pred_fallthru
    _
  // Predicated region
  $region50: #{fc_classifier.1} parent=0 // pred_check
    _
  $region51: #{fc_classifier.1} parent=0 // pred_check_branch
    %554 = sbr.rel (0) target = $region53
  $region52: #{fc_classifier.1} parent=0 // pred_region
    _
  $region53: #{fc_classifier.1} parent=0 // pred_fallthru
    _

</llo_original>
